<compile_context>
chip_gen: v7x
topology: tpu7x:2x2x1
jax: 0.10.0
libtpu: 0.0.40
codegen_flags: <defaults>
</compile_context>

<pallas_src>
import functools

import jax
import jax.numpy as jnp
from jax.experimental import pallas as pl
from jax.experimental.pallas import tpu as pltpu

_SUBLANE = 8                 # f32 sublane granularity for the second-to-last dim
_VMEM_BUDGET = 24 << 20      # stay comfortably under the 32 MiB scoped default


def _round_up(n: int, m: int) -> int:
    return ((n + m - 1) // m) * m


def mlp_kernel(x_ref, w1_ref, b1_ref, w2_ref, b2_ref, o_ref):
    """Fused forward for one batch tile: (x @ W1 + b1) -> ReLU -> (@ W2 + b2) -> sigmoid."""
    x = x_ref[...]                                   # (TB, D_in)
    w1 = w1_ref[...]                                 # (D_in, H)  f32 or bf16
    w2 = w2_ref[...]                                 # (H, O)     f32 or bf16

    # Layer 1: MXU matmul with f32 accumulation; bias + ReLU in f32 on the VPU.
    h = jnp.dot(x.astype(w1.dtype), w1, preferred_element_type=jnp.float32)
    h = jnp.maximum(h + b1_ref[...], 0.0)            # b1: (1, H) broadcasts over rows

    # Layer 2 + sigmoid (exp/recip go to the EUP; f32 accuracy kept post-matmul).
    y = jnp.dot(h.astype(w2.dtype), w2, preferred_element_type=jnp.float32)
    o_ref[...] = jax.nn.sigmoid(y + b2_ref[...]).astype(o_ref.dtype)
    # Note: in a partial last batch block, the out-of-bounds rows hold garbage
    # (possibly inf/NaN after sigmoid) but Pallas masks their writeback -- harmless.


def prepare_params(w1_t, b1, w2_t, b2, *, use_bf16_matmul=False):
    """One-time parameter prep, hoisted out of the per-call path.

    Optionally casts the weights to bf16 (v6e/v7x MXU-friendly; also fine on v5e,
    where the main benefit is simply fewer HBM bytes).  Biases stay f32.
    """
    w_dtype = jnp.bfloat16 if use_bf16_matmul else jnp.float32
    return (
        jnp.asarray(w1_t).astype(w_dtype),
        jnp.asarray(b1, jnp.float32).reshape(1, -1),
        jnp.asarray(w2_t).astype(w_dtype),
        jnp.asarray(b2, jnp.float32).reshape(1, -1),
    )


@functools.partial(jax.jit, static_argnames=("batch_tile",))
def neural_net_forward(x, w1_t, b1, w2_t, b2, *, batch_tile=2048):
    """Forward pass of NeuralNetTorch.

    x:    (B, D_in) activations (any float dtype; cast to weight dtype in-kernel).
    w1_t: (D_in, H)  -- torch layer1.weight transposed.
    b1:   (H,) or (1, H)
    w2_t: (H, O)     -- torch layer2.weight transposed.
    b2:   (O,) or (1, O)
    Returns (B, O) f32.
    """
    B, D_in = x.shape
    H = w1_t.shape[1]
    O = w2_t.shape[1]
    b1 = jnp.asarray(b1, jnp.float32).reshape(1, H)
    b2 = jnp.asarray(b2, jnp.float32).reshape(1, O)

    # --- static batch-tile selection (shapes are static under jit) -------------
    if B <= _SUBLANE:
        # Full-array block: second-to-last dim equals the array dim -> always legal.
        TB = B
    else:
        TB = min(batch_tile, _round_up(B, _SUBLANE))
        # v7x megacore: make sure the "parallel" batch axis has >= 2 grid steps
        # so the second TensorCore isn't idle (v5e/v6e are single-TC, unaffected).
        TB = min(TB, max(_round_up(pl.cdiv(B, 2), _SUBLANE), _SUBLANE))

    # Static VMEM footprint check: x/out tiles double-buffered + resident weights
    # (conservatively counted double-buffered too).  Clamp TB to stay under budget
    # so nothing OOMs/spills when porting between generations (v7x: 64 MiB phys).
    w_bytes = jnp.dtype(w1_t.dtype).itemsize
    x_bytes = jnp.dtype(x.dtype).itemsize

    def _footprint(tb):
        return (tb * D_in * x_bytes * 2            # x tile, double-buffered
                + tb * O * 4 * 2                   # out tile, double-buffered
                + (D_in * H + H * O) * w_bytes * 2 # weights
                + (H + O) * 4 * 2)                 # biases

    while TB > _SUBLANE and _footprint(TB) > _VMEM_BUDGET:
        TB = max(_round_up(TB // 2, _SUBLANE), _SUBLANE)

    grid = (pl.cdiv(B, TB),)

    return pl.pallas_call(
        mlp_kernel,
        out_shape=jax.ShapeDtypeStruct((B, O), jnp.float32),
        grid=grid,
        in_specs=[
            pl.BlockSpec((TB, D_in), lambda i: (i, 0)),   # x: tiled over batch, unpadded
            pl.BlockSpec((D_in, H), lambda i: (0, 0)),    # W1: resident
            pl.BlockSpec((1, H), lambda i: (0, 0)),       # b1: resident
            pl.BlockSpec((H, O), lambda i: (0, 0)),       # W2: resident
            pl.BlockSpec((1, O), lambda i: (0, 0)),       # b2: resident
        ],
        out_specs=pl.BlockSpec((TB, O), lambda i: (i, 0)),  # unpadded output tile
        compiler_params=pltpu.CompilerParams(
            # Independent batch tiles -> parallel axis (sharded across v7x's 2 TCs).
            dimension_semantics=("parallel",),
        ),
    )(x, w1_t, b1, w2_t, b2)


def init_params(key, input_dim, hidden_dim, output_dim):
    """Deterministic init mimicking nn.Linear default: U(-1/sqrt(fan_in), 1/sqrt(fan_in))."""
    k1, k2, k3, k4 = jax.random.split(key, 4)
    bound1 = 1.0 / jnp.sqrt(input_dim)
    bound2 = 1.0 / jnp.sqrt(hidden_dim)
    # PyTorch Linear weight is (out, in); store transposed (in, out) so the kernel does x @ W.
    w1_t = jax.random.uniform(k1, (input_dim, hidden_dim), jnp.float32, -bound1, bound1)
    b1 = jax.random.uniform(k2, (1, hidden_dim), jnp.float32, -bound1, bound1)
    w2_t = jax.random.uniform(k3, (hidden_dim, output_dim), jnp.float32, -bound2, bound2)
    b2 = jax.random.uniform(k4, (1, output_dim), jnp.float32, -bound2, bound2)
    return w1_t, b1, w2_t, b2


def _reference(x, w1_t, b1, w2_t, b2):
    return jax.nn.sigmoid(jnp.maximum(x @ w1_t + b1, 0.0) @ w2_t + b2)


if __name__ == "__main__":
    input_dim, hidden_dim, output_dim = 16, 32, 8
    batch = 4

    key = jax.random.PRNGKey(0)
    kx, kp = jax.random.split(key)
    x = jax.random.normal(kx, (batch, input_dim), jnp.float32)
    w1_t, b1, w2_t, b2 = init_params(kp, input_dim, hidden_dim, output_dim)

    # 1) Small batch, f32 weights (tight tolerance).
    params_f32 = prepare_params(w1_t, b1, w2_t, b2, use_bf16_matmul=False)
    out = jax.block_until_ready(neural_net_forward(x, *params_f32))
    ref = _reference(x, w1_t, b1, w2_t, b2)
    assert out.shape == (batch, output_dim)
    assert jnp.allclose(out, ref, atol=1e-5, rtol=1e-5)

    # 2) Larger, non-multiple batch with batch tiling + bf16 weights
    #    (exercises the cdiv grid / partial last block; v6e/v7x-preferred config).
    big_batch = 260
    xb = jax.random.normal(jax.random.PRNGKey(1), (big_batch, input_dim), jnp.float32)
    params_bf16 = prepare_params(w1_t, b1, w2_t, b2, use_bf16_matmul=True)
    out_b = jax.block_until_ready(neural_net_forward(xb, *params_bf16, batch_tile=128))
    ref_b = _reference(xb, w1_t, b1, w2_t, b2)
    assert out_b.shape == (big_batch, output_dim)
    assert jnp.allclose(out_b, ref_b, atol=2e-2, rtol=2e-2)

    print("KERNEL_OK")
</pallas_src>

<mosaic_0001>
module attributes {stable_mosaic.version = 11 : i64} {
  func.func @mlp_kernel(%arg0: i32, %arg1: memref<4x16xf32, #tpu.memory_space<vmem>>, %arg2: memref<16x32xf32, #tpu.memory_space<vmem>>, %arg3: memref<1x32xf32, #tpu.memory_space<vmem>>, %arg4: memref<32x8xf32, #tpu.memory_space<vmem>>, %arg5: memref<1x8xf32, #tpu.memory_space<vmem>>, %arg6: memref<4x8xf32, #tpu.memory_space<vmem>>) attributes {dimension_semantics = [#tpu.dimension_semantics<parallel>], iteration_bounds = array<i64: 1>, scalar_prefetch = 0 : i64, scratch_operands = 0 : i64, tpu.core_type = #tpu.core_type<tc>, window_params = [{transform_indices = @transform_0, window_bounds = array<i64: 4, 16>}, {pipeline_mode = #tpu.pipeline_mode<synchronous>, transform_indices = @transform_1, window_bounds = array<i64: 16, 32>}, {pipeline_mode = #tpu.pipeline_mode<synchronous>, transform_indices = @transform_2, window_bounds = array<i64: 1, 32>}, {pipeline_mode = #tpu.pipeline_mode<synchronous>, transform_indices = @transform_3, window_bounds = array<i64: 32, 8>}, {pipeline_mode = #tpu.pipeline_mode<synchronous>, transform_indices = @transform_4, window_bounds = array<i64: 1, 8>}, {transform_indices = @transform_5, window_bounds = array<i64: 4, 8>}]} {
    %c0 = arith.constant 0 : index
    %c0_0 = arith.constant 0 : index
    %0 = vector.load %arg1[%c0, %c0_0] : memref<4x16xf32, #tpu.memory_space<vmem>>, vector<4x16xf32>
    %c0_1 = arith.constant 0 : index
    %c0_2 = arith.constant 0 : index
    %1 = vector.load %arg2[%c0_1, %c0_2] : memref<16x32xf32, #tpu.memory_space<vmem>>, vector<16x32xf32>
    %c0_3 = arith.constant 0 : index
    %c0_4 = arith.constant 0 : index
    %2 = vector.load %arg4[%c0_3, %c0_4] : memref<32x8xf32, #tpu.memory_space<vmem>>, vector<32x8xf32>
    %cst = arith.constant dense<0.000000e+00> : vector<4x32xf32>
    %3 = tpu.matmul %0, %1, %cst {dimension_numbers = #tpu.dot_dimension_numbers<[1], [0], [0], [1], [0, 0, 1, 1], [], []>} : vector<4x16xf32>, vector<16x32xf32>, vector<4x32xf32> -> vector<4x32xf32>
    %c0_5 = arith.constant 0 : index
    %c0_6 = arith.constant 0 : index
    %4 = vector.load %arg3[%c0_5, %c0_6] : memref<1x32xf32, #tpu.memory_space<vmem>>, vector<1x32xf32>
    %5 = vector.broadcast %4 : vector<1x32xf32> to vector<4x32xf32>
    %6 = arith.addf %3, %5 : vector<4x32xf32>
    %cst_7 = arith.constant 0.000000e+00 : f32
    %7 = vector.broadcast %cst_7 : f32 to vector<4x32xf32>
    %8 = arith.maximumf %6, %7 : vector<4x32xf32>
    %cst_8 = arith.constant dense<0.000000e+00> : vector<4x8xf32>
    %9 = tpu.matmul %8, %2, %cst_8 {dimension_numbers = #tpu.dot_dimension_numbers<[1], [0], [0], [1], [0, 0, 1, 1], [], []>} : vector<4x32xf32>, vector<32x8xf32>, vector<4x8xf32> -> vector<4x8xf32>
    %c0_9 = arith.constant 0 : index
    %c0_10 = arith.constant 0 : index
    %10 = vector.load %arg5[%c0_9, %c0_10] : memref<1x8xf32, #tpu.memory_space<vmem>>, vector<1x8xf32>
    %11 = vector.broadcast %10 : vector<1x8xf32> to vector<4x8xf32>
    %12 = arith.addf %9, %11 : vector<4x8xf32>
    %13 = arith.negf %12 : vector<4x8xf32>
    %14 = math.exp %13 : vector<4x8xf32>
    %cst_11 = arith.constant 1.000000e+00 : f32
    %15 = vector.broadcast %cst_11 : f32 to vector<4x8xf32>
    %16 = arith.addf %15, %14 : vector<4x8xf32>
    %17 = arith.divf %15, %16 : vector<4x8xf32>
    %c0_12 = arith.constant 0 : index
    %c0_13 = arith.constant 0 : index
    %18 = vector.load %arg6[%c0_12, %c0_13] : memref<4x8xf32, #tpu.memory_space<vmem>>, vector<4x8xf32>
    tpu.vector_store %arg6[%c0_12, %c0_13], %17 {strides = array<i32>} : memref<4x8xf32, #tpu.memory_space<vmem>>, vector<4x8xf32>,
    return
  }
  func.func @transform_0(%arg0: i32) -> (i32, i32) {
    %c0_i32 = arith.constant 0 : i32
    %c0_i32_0 = arith.constant 0 : i32
    return %arg0, %c0_i32 : i32, i32
  }
  func.func @transform_1(%arg0: i32) -> (i32, i32) {
    %c0_i32 = arith.constant 0 : i32
    %c0_i32_0 = arith.constant 0 : i32
    %c0_i32_1 = arith.constant 0 : i32
    return %c0_i32, %c0_i32_0 : i32, i32
  }
  func.func @transform_2(%arg0: i32) -> (i32, i32) {
    %c0_i32 = arith.constant 0 : i32
    %c0_i32_0 = arith.constant 0 : i32
    %c0_i32_1 = arith.constant 0 : i32
    return %c0_i32, %c0_i32_0 : i32, i32
  }
  func.func @transform_3(%arg0: i32) -> (i32, i32) {
    %c0_i32 = arith.constant 0 : i32
    %c0_i32_0 = arith.constant 0 : i32
    %c0_i32_1 = arith.constant 0 : i32
    return %c0_i32, %c0_i32_0 : i32, i32
  }
  func.func @transform_4(%arg0: i32) -> (i32, i32) {
    %c0_i32 = arith.constant 0 : i32
    %c0_i32_0 = arith.constant 0 : i32
    %c0_i32_1 = arith.constant 0 : i32
    return %c0_i32, %c0_i32_0 : i32, i32
  }
  func.func @transform_5(%arg0: i32) -> (i32, i32) {
    %c0_i32 = arith.constant 0 : i32
    %c0_i32_0 = arith.constant 0 : i32
    return %arg0, %c0_i32 : i32, i32
  }
}

</mosaic_0001>

<llo_original>
// kernel: neural_net_forward.1
$region0: #{neural_net_forward.1}
  #allocation0 [shape = 'u32[]', space=smem, size = 0x4, offset = 0x4, fixed_abs, tag = 'smem constant byte address 0x4 - core index']
  #allocation1 [shape = 'u32[144,128]{1,0:T(1,128)}', space=vmem, size = 0x12000, scoped, tag = 'internal scratch']
  %s0 = inlined_call_operand.vmem [shape: f32[4,16], index: 0, kind: input, shape index: {}]
  %s1 = inlined_call_operand.vmem [shape: f32[16,32], index: 1, kind: input, shape index: {}]
  %s2 = inlined_call_operand.vmem [shape: f32[1,32], index: 2, kind: input, shape index: {}]
  %s3 = inlined_call_operand.vmem [shape: f32[32,8], index: 3, kind: input, shape index: {}]
  %s4 = inlined_call_operand.vmem [shape: f32[1,8], index: 4, kind: input, shape index: {}]
  %s5 = inlined_call_operand.hbm [shape: f32[4,8], index: 5, kind: output, shape index: {}]
  %s6 = sld [smem:[#allocation0]]
  $region30: #{neural_net_forward.1} parent=0
    _
  %s8 = ssub.s32 1, %s6
  %s9 = scalar_select 0, %s8, %s6
  $region1: #{neural_net_forward.1} parent=0
    #allocation2 [shape = 'u8[2048]{0}', space=vmem, size = 0x800, scoped, tag = 'output window, operand 0, single buffered']
    #allocation3 [shape = 's32[1]{0}', space=sflag, size = 0x4, scoped, tag = 'scoped memory for neural_net_forward.1']
    %10 = vsyncpa [#allocation3], 0
    // Predicated region
    $region2: #{neural_net_forward.1} parent=1 // pred_check
      _
    $region3: #{neural_net_forward.1} parent=1 // pred_check_branch
      %12 = sbr.rel (0) target = $region5
    $region4: #{neural_net_forward.1} parent=1 // pred_region
      _
    $region5: #{neural_net_forward.1} parent=1 // pred_fallthru
      _
    // Predicated region
    $region6: #{neural_net_forward.1} parent=1 // pred_check
      _
    $region7: #{neural_net_forward.1} parent=1 // pred_check_branch
      %14 = sbr.rel (0) target = $region9
    $region8: #{neural_net_forward.1} parent=1 // pred_region
      _
    $region9: #{neural_net_forward.1} parent=1 // pred_fallthru
      _
    // Predicated region
    $region10: #{neural_net_forward.1} parent=1 // pred_check
      _
    $region11: #{neural_net_forward.1} parent=1 // pred_check_branch
      %16 = sbr.rel (0) target = $region13
    $region12: #{neural_net_forward.1} parent=1 // pred_region
      _
    $region13: #{neural_net_forward.1} parent=1 // pred_fallthru
      _
    // Predicated region
    $region14: #{neural_net_forward.1} parent=1 // pred_check
      _
    $region15: #{neural_net_forward.1} parent=1 // pred_check_branch
      %18 = sbr.rel (0) target = $region17
    $region16: #{neural_net_forward.1} parent=1 // pred_region
      _
    $region17: #{neural_net_forward.1} parent=1 // pred_fallthru
      _
    // Predicated region
    $region18: #{neural_net_forward.1} parent=1 // pred_check
      _
    $region19: #{neural_net_forward.1} parent=1 // pred_check_branch
      %20 = sbr.rel (0) target = $region21
    $region20: #{neural_net_forward.1} parent=1 // pred_region
      _
    $region21: #{neural_net_forward.1} parent=1 // pred_fallthru
      _
    %v21 = vld [vmem:[%s0] sm:$0xf]
    %v22 = vld [vmem:[%s1] sm:$0xff]
    %v23 = vld [vmem:[%s1 + $0x8] sm:$0xff]
    %v24 = vld [vmem:[%s3] sm:$0xff]
    %v25 = vld [vmem:[%s3 + $0x8] sm:$0xff]
    %v26 = vld [vmem:[%s3 + $0x10] sm:$0xff]
    %v27 = vld [vmem:[%s3 + $0x18] sm:$0xff]
    %v28 = vld [vmem:[%s2] sm:$0x1]
    %v30 = vlaneseq
    %v31 = vshrl.u32 %v30, 7
    %v32 = vsub.s32 0, %v31
    %v33 = vrot.slane %v28, %v32
    %vm35 = vcmask 130048
    %v37 = vsel %vm35, %v21, 0
    %39 = vmatprep.subr.mxu0 0.0
    %40 = vmatpush1.msra.mxu0 %v22
    %41 = vmatprep.subr.mxu0 0.0
    %42 = vmatpush1.msra.mxu0 %v23
    %43 = vmatprep.subr.mxu0 0.0
    %44 = vmatpush1.msra.mxu0 0.0
    %45 = vmatprep.subr.mxu0 0.0
    %46 = vmatpush1.msra.mxu0 0.0
    %47 = vmatprep.subr.mxu0 0.0
    %48 = vmatpush1.msra.mxu0 0.0
    %49 = vmatprep.subr.mxu0 0.0
    %50 = vmatpush1.msra.mxu0 0.0
    %51 = vmatprep.subr.mxu0 0.0
    %52 = vmatpush1.msra.mxu0 0.0
    %53 = vmatprep.subr.mxu0 0.0
    %54 = vmatpush1.msra.mxu0 0.0
    %55 = vmatprep.subr.mxu0 0.0
    %56 = vmatpush1.msra.mxu0 0.0
    %57 = vmatprep.subr.mxu0 0.0
    %58 = vmatpush1.msra.mxu0 0.0
    %59 = vmatprep.subr.mxu0 0.0
    %60 = vmatpush1.msra.mxu0 0.0
    %61 = vmatprep.subr.mxu0 0.0
    %62 = vmatpush1.msra.mxu0 0.0
    %63 = vmatprep.subr.mxu0 0.0
    %64 = vmatpush1.msra.mxu0 0.0
    %65 = vmatprep.subr.mxu0 0.0
    %66 = vmatpush1.msra.mxu0 0.0
    %67 = vmatprep.subr.mxu0 0.0
    %68 = vmatpush1.msra.mxu0 0.0
    %69 = vmatprep.subr.mxu0 0.0
    %70 = vmatpush1.msra.mxu0 0.0
    %71 = vmatprep.subr.mxu0 0.0
    %72 = vmatpush1.msra.mxu0 0.0
    %73 = vmatprep.subr.mxu0 0.0
    %74 = vmatpush1.msra.mxu0 0.0
    %75 = vmatprep.subr.mxu0 0.0
    %76 = vmatpush1.msra.mxu0 0.0
    %77 = vmatprep.subr.mxu0 0.0
    %78 = vmatpush1.msra.mxu0 0.0
    %79 = vmatprep.subr.mxu0 0.0
    %80 = vmatpush1.msra.mxu0 0.0
    %81 = vmatprep.subr.mxu0 0.0
    %82 = vmatpush1.msra.mxu0 0.0
    %83 = vmatprep.subr.mxu0 0.0
    %84 = vmatpush1.msra.mxu0 0.0
    %85 = vmatprep.subr.mxu0 0.0
    %86 = vmatpush1.msra.mxu0 0.0
    %87 = vmatprep.subr.mxu0 0.0
    %88 = vmatpush1.msra.mxu0 0.0
    %89 = vmatprep.subr.mxu0 0.0
    %90 = vmatpush1.msra.mxu0 0.0
    %91 = vmatprep.subr.mxu0 0.0
    %92 = vmatpush1.msra.mxu0 0.0
    %93 = vmatprep.subr.mxu0 0.0
    %94 = vmatpush1.msra.mxu0 0.0
    %95 = vmatprep.subr.mxu0 0.0
    %96 = vmatpush1.msra.mxu0 0.0
    %97 = vmatprep.subr.mxu0 0.0
    %98 = vmatpush1.msra.mxu0 0.0
    %99 = vmatprep.subr.mxu0 0.0
    %100 = vmatpush1.msra.mxu0 0.0
    %101 = vmatprep.subr.mxu0 0.0
    %102 = vmatpush1.msra.mxu0 0.0
    %103 = vmatprep.mubr.f32.mxu0 0.0
    %104 = vmatmul.mubr.f32.gmra.mrb[0].mxu0 %v37
    %v105 = vpop.f32.mrb[0].mxu0
    %v106 = vadd.f32 %v33, %v105
    %v107 = vpop.f32.mrb[0].mxu0
    %108 = vdwg.mxu0
    %v109 = vmax.f32 %v106, 0.0
    %v110 = vld [vmem:[%s4] sm:$0x1]
    %v112 = vlaneseq
    %v113 = vshrl.u32 %v112, 7
    %v114 = vsub.s32 0, %v113
    %v115 = vrot.slane %v110, %v114
    %vm117 = vcmask 261120
    %v119 = vsel %vm117, %v109, 0
    %121 = vmatprep.subr.mxu0 0.0
    %122 = vmatpush1.msra.mxu0 %v24
    %123 = vmatprep.subr.mxu0 0.0
    %124 = vmatpush1.msra.mxu0 %v25
    %125 = vmatprep.subr.mxu0 0.0
    %126 = vmatpush1.msra.mxu0 %v26
    %127 = vmatprep.subr.mxu0 0.0
    %128 = vmatpush1.msra.mxu0 %v27
    %129 = vmatprep.subr.mxu0 0.0
    %130 = vmatpush1.msra.mxu0 0.0
    %131 = vmatprep.subr.mxu0 0.0
    %132 = vmatpush1.msra.mxu0 0.0
    %133 = vmatprep.subr.mxu0 0.0
    %134 = vmatpush1.msra.mxu0 0.0
    %135 = vmatprep.subr.mxu0 0.0
    %136 = vmatpush1.msra.mxu0 0.0
    %137 = vmatprep.subr.mxu0 0.0
    %138 = vmatpush1.msra.mxu0 0.0
    %139 = vmatprep.subr.mxu0 0.0
    %140 = vmatpush1.msra.mxu0 0.0
    %141 = vmatprep.subr.mxu0 0.0
    %142 = vmatpush1.msra.mxu0 0.0
    %143 = vmatprep.subr.mxu0 0.0
    %144 = vmatpush1.msra.mxu0 0.0
    %145 = vmatprep.subr.mxu0 0.0
    %146 = vmatpush1.msra.mxu0 0.0
    %147 = vmatprep.subr.mxu0 0.0
    %148 = vmatpush1.msra.mxu0 0.0
    %149 = vmatprep.subr.mxu0 0.0
    %150 = vmatpush1.msra.mxu0 0.0
    %151 = vmatprep.subr.mxu0 0.0
    %152 = vmatpush1.msra.mxu0 0.0
    %153 = vmatprep.subr.mxu0 0.0
    %154 = vmatpush1.msra.mxu0 0.0
    %155 = vmatprep.subr.mxu0 0.0
    %156 = vmatpush1.msra.mxu0 0.0
    %157 = vmatprep.subr.mxu0 0.0
    %158 = vmatpush1.msra.mxu0 0.0
    %159 = vmatprep.subr.mxu0 0.0
    %160 = vmatpush1.msra.mxu0 0.0
    %161 = vmatprep.subr.mxu0 0.0
    %162 = vmatpush1.msra.mxu0 0.0
    %163 = vmatprep.subr.mxu0 0.0
    %164 = vmatpush1.msra.mxu0 0.0
    %165 = vmatprep.subr.mxu0 0.0
    %166 = vmatpush1.msra.mxu0 0.0
    %167 = vmatprep.subr.mxu0 0.0
    %168 = vmatpush1.msra.mxu0 0.0
    %169 = vmatprep.subr.mxu0 0.0
    %170 = vmatpush1.msra.mxu0 0.0
    %171 = vmatprep.subr.mxu0 0.0
    %172 = vmatpush1.msra.mxu0 0.0
    %173 = vmatprep.subr.mxu0 0.0
    %174 = vmatpush1.msra.mxu0 0.0
    %175 = vmatprep.subr.mxu0 0.0
    %176 = vmatpush1.msra.mxu0 0.0
    %177 = vmatprep.subr.mxu0 0.0
    %178 = vmatpush1.msra.mxu0 0.0
    %179 = vmatprep.subr.mxu0 0.0
    %180 = vmatpush1.msra.mxu0 0.0
    %181 = vmatprep.subr.mxu0 0.0
    %182 = vmatpush1.msra.mxu0 0.0
    %183 = vmatprep.subr.mxu0 0.0
    %184 = vmatpush1.msra.mxu0 0.0
    %185 = vmatprep.mubr.f32.mxu0 0.0
    %186 = vmatmul.mubr.f32.gmra.mrb[0].mxu0 %v119
    %v187 = vpop.f32.mrb[0].mxu0
    %v188 = vadd.f32 %v115, %v187
    %v189 = vpop.f32.mrb[0].mxu0
    %190 = vdwg.mxu0
    %v191 = vxor.u32 %v188, 2147483648
    %v192 = vmul.f32 %v191, 1.442695
    %v193 = vpow.pop %v192
    %v194 = vadd.f32 %v193, 1.0
    %v195 = vrcp.pop %v194
    %v196 = vmul.f32 1.0, %v195
    %vm197 = vcmask 60416
    %198 = vst.msk [vmem:[#allocation2] sm:$0xf] %vm197, %v196
    // Predicated region
    $region22: #{neural_net_forward.1} parent=1 // pred_check
      _
    $region23: #{neural_net_forward.1} parent=1 // pred_check_branch
      %200 = sbr.rel (0) target = $region25
    $region24: #{neural_net_forward.1} parent=1 // pred_region
      %s202 = ssub.s32 64, 64
      %203 = vsyncadd [#allocation3], %s202
      %s205 = sshll.u32 [#allocation2], 4
      %s206 = int_to_ptr.vmem [resolvable:$true] %s205
      %208 = dma.vmem_to_hbm [thread:$0]  %s206, 64, %s5, [#allocation3]
    $region25: #{neural_net_forward.1} parent=1 // pred_fallthru
      _
    // Predicated region
    $region26: #{neural_net_forward.1} parent=1 // pred_check
      _
    $region27: #{neural_net_forward.1} parent=1 // pred_check_branch
      %210 = sbr.rel (0) target = $region29
    $region28: #{neural_net_forward.1} parent=1 // pred_region
      %211 = dma.done [#allocation3], 64
    $region29: #{neural_net_forward.1} parent=1 // pred_fallthru
      _
    %212 = vsyncpa [#allocation3], 1

</llo_original>
